<compile_context>
chip_gen: v7x
topology: tpu7x:2x2x1
jax: 0.10.0
libtpu: 0.0.40
codegen_flags: <defaults>
</compile_context>

<pallas_src>
import functools
import math

import jax
import jax.numpy as jnp
from jax.experimental import pallas as pl
from jax.experimental.pallas import tpu as pltpu

ALPHA = 0.25
GAMMA = 2.0

_LANE = 128
_SUBLANE = 8
_MIN_BLOCK_ROWS = 256          # amortize the ~0.35 us per-grid-step overhead
_TARGET_GRID_STEPS = 8         # enough steps for 2-TC sharding + DMA overlap
_TILE_BYTES = 1 << 20          # ~1 MiB per streamed tile (HBM roofline plateau)
_VMEM_LIMIT_BYTES = 32 * 1024 * 1024  # headroom for f32 intermediates (v5e default is 16 MiB)


def _round_up(x, m):
    return ((x + m - 1) // m) * m


def _focal_kernel(x_ref, t_ref, o_ref, *, alpha, gamma):
    x = x_ref[...].astype(jnp.float32)
    t = t_ref[...].astype(jnp.float32)

    # One shared transcendental: e = exp(-|x|) feeds both sigmoid and log1p.
    e = jnp.exp(-jnp.abs(x))
    inv = pl.reciprocal(1.0 + e, approx=False)  # exact; approx would hurt accuracy, not speed
    # Numerically stable sigmoid: 1/(1+e) for x>=0, e/(1+e) for x<0.
    pred = jnp.where(x >= 0.0, inv, e * inv)

    # binary_cross_entropy_with_logits(x, t, reduction='none'), stable form:
    #   ce = max(x, 0) - x*t + log(1 + exp(-|x|))
    ce = jnp.maximum(x, 0.0) - x * t + jnp.log1p(e)

    # alpha weighting: t*alpha + (1-t)*(1-alpha)
    alpha_w = t * alpha + (1.0 - t) * (1.0 - alpha)

    # pt = pred where t == 1 else (1 - pred)   (matches the PyTorch module exactly)
    pt = jnp.where(t == 1.0, pred, 1.0 - pred)

    q = 1.0 - pt
    if gamma == 2.0:
        mod = q * q            # VPU multiply instead of a float pow
    elif gamma == 1.0:
        mod = q
    elif gamma == 0.0:
        mod = jnp.ones_like(q)
    else:
        # Clamp: q can round to a tiny negative; non-integer gamma would give NaN.
        mod = jnp.maximum(q, 0.0) ** gamma

    o_ref[...] = (alpha_w * mod * ce).astype(o_ref.dtype)


def focal_loss(pred_logits, target, alpha=ALPHA, gamma=GAMMA):
    """Elementwise focal loss. pred_logits/target: same shape (e.g. NCHW)."""
    assert pred_logits.shape == target.shape
    orig_shape = pred_logits.shape
    out_dtype = pred_logits.dtype

    total = math.prod(orig_shape) if orig_shape else 1
    rows = pl.cdiv(total, _LANE)
    pad = rows * _LANE - total  # < 128; zero for the common 128-aligned case

    x_flat = pred_logits.reshape(-1)
    t_flat = target.reshape(-1)
    if pad:
        # Only taken when the flat size is not a multiple of 128 (the one
        # remaining copy pass); 128-aligned shapes are fully zero-copy.
        x_flat = jnp.pad(x_flat, (0, pad))
        t_flat = jnp.pad(t_flat, (0, pad))

    x2d = x_flat.reshape(rows, _LANE)
    t2d = t_flat.reshape(rows, _LANE)

    # Byte-aware max block (~1 MiB per streamed tile: f32 -> 2048 rows, bf16 -> 4096).
    itemsize = max(pred_logits.dtype.itemsize, target.dtype.itemsize)
    max_block_rows = _round_up(
        max(_TILE_BYTES // (_LANE * itemsize), _MIN_BLOCK_ROWS), _SUBLANE)

    if rows <= _MIN_BLOCK_ROWS:
        # Tiny tensor: one full-extent block (sublane dim equals full array dim,
        # so no multiple-of-8 requirement and no padding).
        block_rows = rows
    else:
        # Aim for ~_TARGET_GRID_STEPS grid steps (v7x 2-TC sharding + DMA
        # overlap) while keeping blocks between _MIN_BLOCK_ROWS and the ~1 MiB cap.
        block_rows = min(
            max_block_rows,
            max(_MIN_BLOCK_ROWS,
                _round_up(pl.cdiv(rows, _TARGET_GRID_STEPS), _SUBLANE)))

    grid = (pl.cdiv(rows, block_rows),)  # last block may be partial; Pallas masks it
    block = (block_rows, _LANE)

    kernel = functools.partial(_focal_kernel, alpha=alpha, gamma=gamma)

    out2d = pl.pallas_call(
        kernel,
        out_shape=jax.ShapeDtypeStruct((rows, _LANE), out_dtype),
        grid_spec=pltpu.PrefetchScalarGridSpec(
            num_scalar_prefetch=0,
            grid=grid,
            in_specs=[
                pl.BlockSpec(block, lambda i: (i, 0)),
                pl.BlockSpec(block, lambda i: (i, 0)),
            ],
            out_specs=pl.BlockSpec(block, lambda i: (i, 0)),
        ),
        compiler_params=pltpu.CompilerParams(
            dimension_semantics=("parallel",),
            vmem_limit_bytes=_VMEM_LIMIT_BYTES,
        ),
    )(x2d, t2d)

    out_flat = out2d.reshape(-1)
    if pad:
        out_flat = out_flat[:total]
    return out_flat.reshape(orig_shape)


def focal_loss_ref(pred_logits, target, alpha=ALPHA, gamma=GAMMA):
    """Pure-JAX reference mirroring the PyTorch module (stable formulation)."""
    x = pred_logits.astype(jnp.float32)
    t = target.astype(jnp.float32)
    e = jnp.exp(-jnp.abs(x))
    pred = jnp.where(x >= 0.0, 1.0 / (1.0 + e), e / (1.0 + e))
    ce = jnp.maximum(x, 0.0) - x * t + jnp.log1p(e)
    alpha_w = t * alpha + (1.0 - t) * (1.0 - alpha)
    pt = jnp.where(t == 1.0, pred, 1.0 - pred)
    return (alpha_w * (1.0 - pt) ** gamma * ce).astype(pred_logits.dtype)


if __name__ == "__main__":
    key = jax.random.PRNGKey(0)
    k1, k2, k3, k4, k5, k6 = jax.random.split(key, 6)

    # 1) NCHW small shape (flat size multiple of 128 -> zero-copy, single block).
    B, C, H, W = 2, 4, 16, 16
    pred_logits = jax.random.normal(k1, (B, C, H, W), dtype=jnp.float32) * 2.0
    target = (jax.random.uniform(k2, (B, C, H, W)) > 0.5).astype(jnp.float32)
    out = jax.block_until_ready(focal_loss(pred_logits, target))
    ref = focal_loss_ref(pred_logits, target)
    assert out.shape == (B, C, H, W)
    assert jnp.allclose(out, ref, atol=1e-5, rtol=1e-5), "mismatch vs reference"

    # 2) Non-128-divisible flat size exercises the (small) padding path.
    B2, C2, H2, W2 = 2, 3, 17, 19
    pred2 = jax.random.normal(k3, (B2, C2, H2, W2), dtype=jnp.float32) * 2.0
    targ2 = (jax.random.uniform(k4, (B2, C2, H2, W2)) > 0.5).astype(jnp.float32)
    out2 = jax.block_until_ready(focal_loss(pred2, targ2))
    ref2 = focal_loss_ref(pred2, targ2)
    assert out2.shape == (B2, C2, H2, W2)
    assert jnp.allclose(out2, ref2, atol=1e-5, rtol=1e-5), "mismatch (padded path)"

    # 3) Medium shape: multi-step grid with a partial last block (masked writes).
    B3, C3, H3, W3 = 2, 4, 125, 128   # rows = 1000 -> block 256 -> grid 4, last block partial
    pred3 = jax.random.normal(k5, (B3, C3, H3, W3), dtype=jnp.float32) * 2.0
    targ3 = (jax.random.uniform(k6, (B3, C3, H3, W3)) > 0.5).astype(jnp.float32)
    out3 = jax.block_until_ready(focal_loss(pred3, targ3))
    ref3 = focal_loss_ref(pred3, targ3)
    assert out3.shape == (B3, C3, H3, W3)
    assert jnp.allclose(out3, ref3, atol=1e-5, rtol=1e-5), "mismatch (partial block path)"

    print("KERNEL_OK")
</pallas_src>

<mosaic_0001>
module attributes {stable_mosaic.version = 11 : i64} {
  func.func @_focal_kernel(%arg0: i32, %arg1: memref<16x128xf32, #tpu.memory_space<vmem>>, %arg2: memref<16x128xf32, #tpu.memory_space<vmem>>, %arg3: memref<16x128xf32, #tpu.memory_space<vmem>>) attributes {dimension_semantics = [#tpu.dimension_semantics<parallel>], iteration_bounds = array<i64: 1>, scalar_prefetch = 0 : i64, scratch_operands = 0 : i64, tpu.core_type = #tpu.core_type<tc>, window_params = [{transform_indices = @transform_0, window_bounds = array<i64: 16, 128>}, {transform_indices = @transform_1, window_bounds = array<i64: 16, 128>}, {transform_indices = @transform_2, window_bounds = array<i64: 16, 128>}]} {
    %c0 = arith.constant 0 : index
    %c0_0 = arith.constant 0 : index
    %0 = vector.load %arg1[%c0, %c0_0] : memref<16x128xf32, #tpu.memory_space<vmem>>, vector<16x128xf32>
    %c0_1 = arith.constant 0 : index
    %c0_2 = arith.constant 0 : index
    %1 = vector.load %arg2[%c0_1, %c0_2] : memref<16x128xf32, #tpu.memory_space<vmem>>, vector<16x128xf32>
    %2 = math.absf %0 : vector<16x128xf32>
    %cst = arith.constant 0.000000e+00 : f32
    %3 = vector.broadcast %cst : f32 to vector<16x128xf32>
    %4 = arith.subf %3, %2 : vector<16x128xf32>
    %5 = math.exp %4 : vector<16x128xf32>
    %cst_3 = arith.constant 1.000000e+00 : f32
    %6 = vector.broadcast %cst_3 : f32 to vector<16x128xf32>
    %7 = arith.addf %6, %5 : vector<16x128xf32>
    %8 = tpu.reciprocal %7 : vector<16x128xf32> -> vector<16x128xf32>
    %cst_4 = arith.constant 0.000000e+00 : f32
    %9 = vector.broadcast %cst_4 : f32 to vector<16x128xf32>
    %10 = arith.cmpf oge, %0, %9 : vector<16x128xf32>
    %11 = arith.mulf %5, %8 : vector<16x128xf32>
    %12 = arith.select %10, %8, %11 : vector<16x128xi1>, vector<16x128xf32>
    %cst_5 = arith.constant 0.000000e+00 : f32
    %13 = vector.broadcast %cst_5 : f32 to vector<16x128xf32>
    %14 = arith.maximumf %0, %13 : vector<16x128xf32>
    %15 = arith.mulf %0, %1 : vector<16x128xf32>
    %16 = arith.subf %14, %15 : vector<16x128xf32>
    %17 = math.log1p %5 : vector<16x128xf32>
    %18 = arith.addf %16, %17 : vector<16x128xf32>
    %cst_6 = arith.constant 2.500000e-01 : f32
    %19 = vector.broadcast %cst_6 : f32 to vector<16x128xf32>
    %20 = arith.mulf %1, %19 : vector<16x128xf32>
    %cst_7 = arith.constant 1.000000e+00 : f32
    %21 = vector.broadcast %cst_7 : f32 to vector<16x128xf32>
    %22 = arith.subf %21, %1 : vector<16x128xf32>
    %cst_8 = arith.constant 7.500000e-01 : f32
    %23 = vector.broadcast %cst_8 : f32 to vector<16x128xf32>
    %24 = arith.mulf %22, %23 : vector<16x128xf32>
    %25 = arith.addf %20, %24 : vector<16x128xf32>
    %cst_9 = arith.constant 1.000000e+00 : f32
    %26 = vector.broadcast %cst_9 : f32 to vector<16x128xf32>
    %27 = arith.cmpf oeq, %1, %26 : vector<16x128xf32>
    %cst_10 = arith.constant 1.000000e+00 : f32
    %28 = vector.broadcast %cst_10 : f32 to vector<16x128xf32>
    %29 = arith.subf %28, %12 : vector<16x128xf32>
    %30 = arith.select %27, %12, %29 : vector<16x128xi1>, vector<16x128xf32>
    %cst_11 = arith.constant 1.000000e+00 : f32
    %31 = vector.broadcast %cst_11 : f32 to vector<16x128xf32>
    %32 = arith.subf %31, %30 : vector<16x128xf32>
    %33 = arith.mulf %32, %32 : vector<16x128xf32>
    %34 = arith.mulf %25, %33 : vector<16x128xf32>
    %35 = arith.mulf %34, %18 : vector<16x128xf32>
    %c0_12 = arith.constant 0 : index
    %c0_13 = arith.constant 0 : index
    %36 = vector.load %arg3[%c0_12, %c0_13] : memref<16x128xf32, #tpu.memory_space<vmem>>, vector<16x128xf32>
    tpu.vector_store %arg3[%c0_12, %c0_13], %35 {strides = array<i32>} : memref<16x128xf32, #tpu.memory_space<vmem>>, vector<16x128xf32>,
    return
  }
  func.func @transform_0(%arg0: i32) -> (i32, i32) {
    %c0_i32 = arith.constant 0 : i32
    %c0_i32_0 = arith.constant 0 : i32
    return %arg0, %c0_i32 : i32, i32
  }
  func.func @transform_1(%arg0: i32) -> (i32, i32) {
    %c0_i32 = arith.constant 0 : i32
    %c0_i32_0 = arith.constant 0 : i32
    return %arg0, %c0_i32 : i32, i32
  }
  func.func @transform_2(%arg0: i32) -> (i32, i32) {
    %c0_i32 = arith.constant 0 : i32
    %c0_i32_0 = arith.constant 0 : i32
    return %arg0, %c0_i32 : i32, i32
  }
}

</mosaic_0001>

<llo_original>
// kernel: tpu_custom_call.1
$region0: #{tpu_custom_call.1}
  #allocation0 [shape = 'u32[]', space=smem, size = 0x4, offset = 0x4, fixed_abs, tag = 'smem constant byte address 0x4 - core index']
  #allocation1 [shape = 'u32[144,128]{1,0:T(1,128)}', space=vmem, size = 0x12000, scoped, tag = 'internal scratch']
  %s0 = inlined_call_operand.hbm [shape: f32[16,128], index: 0, kind: input, shape index: {}]
  %s1 = inlined_call_operand.hbm [shape: f32[16,128], index: 1, kind: input, shape index: {}]
  %s2 = inlined_call_operand.hbm [shape: f32[16,128], index: 2, kind: output, shape index: {}]
  %s3 = sld [smem:[#allocation0]]
  $region26: #{tpu_custom_call.1} parent=0
    _
  %s5 = ssub.s32 1, %s3
  %s6 = scalar_select 0, %s5, %s3
  $region1: #{tpu_custom_call.1} parent=0
    #allocation2 [shape = 'u8[8192]{0}', space=vmem, size = 0x2000, scoped, tag = 'input window, operand 0, single buffered']
    #allocation3 [shape = 's32[1]{0}', space=sflag, size = 0x4, scoped, tag = 'scoped memory for tpu_custom_call.1']
    #allocation4 [shape = 's32[1]{0}', space=sflag, size = 0x4, scoped, tag = 'scoped memory for tpu_custom_call.1']
    #allocation5 [shape = 'u8[8192]{0}', space=vmem, size = 0x2000, scoped, tag = 'input window, operand 1, single buffered']
    #allocation6 [shape = 's32[1]{0}', space=sflag, size = 0x4, scoped, tag = 'scoped memory for tpu_custom_call.1']
    #allocation7 [shape = 'u8[8192]{0}', space=vmem, size = 0x2000, scoped, tag = 'output window, operand 0, single buffered']
    %7 = vsyncpa [#allocation3], 0
    %8 = vsyncpa [#allocation6], 0
    %9 = vsyncpa [#allocation4], 0
    // Predicated region
    $region2: #{tpu_custom_call.1} parent=1 // pred_check
      _
    $region3: #{tpu_custom_call.1} parent=1 // pred_check_branch
      %11 = sbr.rel (0) target = $region5
    $region4: #{tpu_custom_call.1} parent=1 // pred_region
      %s13 = ssub.s32 256, 256
      %14 = vsyncadd [#allocation3], %s13
      %s15 = sshll.u32 [#allocation2], 4
      %s16 = int_to_ptr.vmem [resolvable:$true] %s15
      %21 = dma.hbm_to_vmem [thread:$0]  %s0, 256, %s16, [#allocation3], 128, 128, 8
    $region5: #{tpu_custom_call.1} parent=1 // pred_fallthru
      _
    // Predicated region
    $region6: #{tpu_custom_call.1} parent=1 // pred_check
      _
    $region7: #{tpu_custom_call.1} parent=1 // pred_check_branch
      %23 = sbr.rel (0) target = $region9
    $region8: #{tpu_custom_call.1} parent=1 // pred_region
      %s25 = ssub.s32 256, 256
      %26 = vsyncadd [#allocation6], %s25
      %s27 = sshll.u32 [#allocation5], 4
      %s28 = int_to_ptr.vmem [resolvable:$true] %s27
      %33 = dma.hbm_to_vmem [thread:$0]  %s1, 256, %s28, [#allocation6], 128, 128, 8
    $region9: #{tpu_custom_call.1} parent=1 // pred_fallthru
      _
    // Predicated region
    $region10: #{tpu_custom_call.1} parent=1 // pred_check
      _
    $region11: #{tpu_custom_call.1} parent=1 // pred_check_branch
      %35 = sbr.rel (0) target = $region13
    $region12: #{tpu_custom_call.1} parent=1 // pred_region
      %36 = dma.done [#allocation3], 256
    $region13: #{tpu_custom_call.1} parent=1 // pred_fallthru
      _
    // Predicated region
    $region14: #{tpu_custom_call.1} parent=1 // pred_check
      _
    $region15: #{tpu_custom_call.1} parent=1 // pred_check_branch
      %38 = sbr.rel (0) target = $region17
    $region16: #{tpu_custom_call.1} parent=1 // pred_region
      %39 = dma.done [#allocation6], 256
    $region17: #{tpu_custom_call.1} parent=1 // pred_fallthru
      _
    %v40 = vld [vmem:[#allocation2] sm:$0xff]
    %v41 = vld [vmem:[#allocation2 + $0x8] sm:$0xff]
    %v42 = vld [vmem:[#allocation5] sm:$0xff]
    %v43 = vld [vmem:[#allocation5 + $0x8] sm:$0xff]
    %v44 = vand.u32 2147483647, %v40
    %v45 = vand.u32 2147483647, %v41
    %v46 = vsub.f32 0.0, %v44
    %v47 = vsub.f32 0.0, %v45
    %v48 = vmul.f32 %v46, 1.442695
    %v49 = vpow.pop %v48
    %v50 = vmul.f32 %v47, 1.442695
    %v51 = vpow.pop %v50
    %v52 = vadd.f32 %v49, 1.0
    %v53 = vadd.f32 %v51, 1.0
    %v54 = vrcp.pop %v52
    %v55 = vrcp.pop %v53
    %vm56 = vcmp.ge.f32.partialorder %v40, 0.0
    %vm57 = vcmp.ge.f32.partialorder %v41, 0.0
    %v58 = vmul.f32 %v49, %v54
    %v59 = vmul.f32 %v51, %v55
    %v60 = vsel %vm56, %v54, %v58
    %v61 = vsel %vm57, %v55, %v59
    %v62 = vmax.f32 %v40, 0.0
    %v63 = vmax.f32 %v41, 0.0
    %v64 = vmul.f32 %v40, %v42
    %v65 = vmul.f32 %v41, %v43
    %v66 = vsub.f32 %v62, %v64
    %v67 = vsub.f32 %v63, %v65
    %v68 = vadd.f32 %v49, 1.0
    %v69 = vlog2.pop %v68
    %v70 = vmul.f32 %v69, 0.6931472
    %v71 = vmul.f32 -0.5, %v49
    %v72 = vadd.f32 %v71, 1.0
    %v73 = vmul.f32 %v72, %v49
    %v74 = vand.u32 2147483647, %v49
    %vm75 = vcmp.lt.f32.partialorder %v74, 0.0004427343
    %v76 = vsel %vm75, %v73, %v70
    %v77 = vadd.f32 %v51, 1.0
    %v78 = vlog2.pop %v77
    %v79 = vmul.f32 %v78, 0.6931472
    %v80 = vmul.f32 -0.5, %v51
    %v81 = vadd.f32 %v80, 1.0
    %v82 = vmul.f32 %v81, %v51
    %v83 = vand.u32 2147483647, %v51
    %vm84 = vcmp.lt.f32.partialorder %v83, 0.0004427343
    %v85 = vsel %vm84, %v82, %v79
    %v86 = vadd.f32 %v66, %v76
    %v87 = vadd.f32 %v67, %v85
    %v88 = vmul.f32 %v42, 0.25
    %v89 = vmul.f32 %v43, 0.25
    %v90 = vsub.f32 1.0, %v42
    %v91 = vsub.f32 1.0, %v43
    %v92 = vmul.f32 %v90, 0.75
    %v93 = vmul.f32 %v91, 0.75
    %v94 = vadd.f32 %v88, %v92
    %v95 = vadd.f32 %v89, %v93
    %vm96 = vcmp.eq.f32.partialorder %v42, 1.0
    %vm97 = vcmp.eq.f32.partialorder %v43, 1.0
    %v98 = vsub.f32 1.0, %v60
    %v99 = vsub.f32 1.0, %v61
    %v100 = vsel %vm96, %v60, %v98
    %v101 = vsel %vm97, %v61, %v99
    %v102 = vsub.f32 1.0, %v100
    %v103 = vsub.f32 1.0, %v101
    %v104 = vmul.f32 %v102, %v102
    %v105 = vmul.f32 %v103, %v103
    %v106 = vmul.f32 %v94, %v104
    %v107 = vmul.f32 %v95, %v105
    %v108 = vmul.f32 %v106, %v86
    %v109 = vmul.f32 %v107, %v87
    %110 = vst [vmem:[#allocation7] sm:$0xff] %v108
    %111 = vst [vmem:[#allocation7 + $0x8] sm:$0xff] %v109
    // Predicated region
    $region18: #{tpu_custom_call.1} parent=1 // pred_check
      _
    $region19: #{tpu_custom_call.1} parent=1 // pred_check_branch
      %113 = sbr.rel (0) target = $region21
    $region20: #{tpu_custom_call.1} parent=1 // pred_region
      %s115 = ssub.s32 256, 256
      %116 = vsyncadd [#allocation4], %s115
      %s117 = sshll.u32 [#allocation7], 4
      %s118 = int_to_ptr.vmem [resolvable:$true] %s117
      %123 = dma.vmem_to_hbm [thread:$0]  %s118, 256, %s2, [#allocation4], 128, 128, 8
    $region21: #{tpu_custom_call.1} parent=1 // pred_fallthru
      _
    // Predicated region
    $region22: #{tpu_custom_call.1} parent=1 // pred_check
      _
    $region23: #{tpu_custom_call.1} parent=1 // pred_check_branch
      %125 = sbr.rel (0) target = $region25
    $region24: #{tpu_custom_call.1} parent=1 // pred_region
      %126 = dma.done [#allocation4], 256
    $region25: #{tpu_custom_call.1} parent=1 // pred_fallthru
      _
    %127 = vsyncpa [#allocation3], 1
    %128 = vsyncpa [#allocation6], 1
    %129 = vsyncpa [#allocation4], 1

</llo_original>
